<compile_context>
chip_gen: v5e
topology: v5e:2x2
jax: 0.10.0
libtpu: 0.0.40
codegen_flags: <defaults>
</compile_context>

<pallas_src>
import jax
import jax.numpy as jnp
import numpy as np
from jax.experimental import pallas as pl
from jax.experimental.pallas import tpu as pltpu


def _shader_kernel(packed_ref, fc_ref, bg_ref, out_ref):
    # packed_ref: (4, TP) f32, fc_ref: (9, Fp) f32, bg_ref: (3,) f32 SMEM,
    # out_ref:    (4, TP) f32 (channel-major RGBA)
    Fp = fc_ref.shape[1]
    TP = out_ref.shape[1]

    bary = packed_ref[0:3, :]                                   # (3, TP) f32
    pix = pltpu.bitcast(packed_ref[3:4, :], jnp.int32)          # (1, TP) int32

    is_bg = pix < 0                                             # (1, TP) bool
    safe = jnp.where(is_bg, 0, pix)                             # clamp bg to face 0

    # Data-dependent face gather as ONE one-hot MXU matmul (no dynamic gather).
    # TODO(synk): for meshes with thousands of faces, replace the O(P*F) one-hot
    # matmul with an F-tiled grid axis (accumulator scratch) or a true DMA gather.
    onehot = (jax.lax.broadcasted_iota(jnp.int32, (Fp, TP), 0) == safe
              ).astype(jnp.float32)                             # (Fp, TP)
    texel9 = jnp.dot(fc_ref[...], onehot,
                     preferred_element_type=jnp.float32)        # (9, TP)

    # Barycentric-weighted combine of the 3 vertex colors (small VPU work).
    texel = (bary[0:1, :] * texel9[0:3, :]
             + bary[1:2, :] * texel9[3:6, :]
             + bary[2:3, :] * texel9[6:9, :])                   # (3, TP)

    # hard_rgb_blend: background replacement + alpha; one lane-dense full store.
    out_ref[...] = jnp.concatenate(
        [jnp.where(is_bg, bg_ref[0], texel[0:1, :]),
         jnp.where(is_bg, bg_ref[1], texel[1:2, :]),
         jnp.where(is_bg, bg_ref[2], texel[2:3, :]),
         jnp.where(is_bg, 0.0, 1.0).astype(jnp.float32)],
        axis=0)


def simple_shader(pix_to_face, bary_coords, face_vert_colors, background_color,
                  *, tile_pixels=1024):
    """Pallas implementation of SimpleShader.forward.

    pix_to_face:      (N, H, W, K) int32  (only K=0 contributes to the hard blend)
    bary_coords:      (N, H, W, K, 3) f32
    face_vert_colors: (F, 3, 3) f32  per-face per-vertex RGB (TexturesVertex)
    background_color: (3,) f32
    returns:          (N, H, W, 4) f32
    """
    assert tile_pixels % 128 == 0
    N, H, W, K = pix_to_face.shape
    F = face_vert_colors.shape[0]
    P = N * H * W

    # Channel-major fragments (K=0 slot only).
    pix0 = pix_to_face[..., 0].reshape(1, P).astype(jnp.int32)              # (1, P)
    bary0 = jnp.transpose(
        bary_coords[..., 0, :].reshape(P, 3).astype(jnp.float32))           # (3, P)

    # Pad pixel count to a tile multiple (padded pixels are background).
    P_pad = ((P + tile_pixels - 1) // tile_pixels) * tile_pixels
    if P_pad != P:
        pix0 = jnp.pad(pix0, ((0, 0), (0, P_pad - P)), constant_values=-1)
        bary0 = jnp.pad(bary0, ((0, 0), (0, P_pad - P)))

    # Pack bary (f32) + face index (bitcast int32 -> f32 bits) into one input.
    packed = jnp.concatenate(
        [bary0, jax.lax.bitcast_convert_type(pix0, jnp.float32)], axis=0)   # (4, P_pad)

    # Face colors: (F, 3, 3) -> (9, F_pad), F zero-padded to a lane multiple so the
    # one-hot compare / MXU contraction is aligned; padded faces never contribute.
    F_pad = ((F + 127) // 128) * 128
    fc9 = face_vert_colors.astype(jnp.float32).reshape(F, 9)
    if F_pad != F:
        fc9 = jnp.pad(fc9, ((0, F_pad - F), (0, 0)))
    fc9t = jnp.transpose(fc9)                                               # (9, F_pad)

    bg = background_color.astype(jnp.float32).reshape(3)

    out = pl.pallas_call(
        _shader_kernel,
        out_shape=jax.ShapeDtypeStruct((4, P_pad), jnp.float32),
        grid_spec=pltpu.PrefetchScalarGridSpec(
            num_scalar_prefetch=0,
            grid=(P_pad // tile_pixels,),
            in_specs=[
                pl.BlockSpec((4, tile_pixels), lambda i: (0, i)),
                pl.BlockSpec((9, F_pad), lambda i: (0, 0)),
                pl.BlockSpec(memory_space=pltpu.MemorySpace.SMEM),
            ],
            out_specs=pl.BlockSpec((4, tile_pixels), lambda i: (0, i)),
        ),
        compiler_params=pltpu.CompilerParams(
            dimension_semantics=("parallel",),
            vmem_limit_bytes=32 * 1024 * 1024),
    )(packed, fc9t, bg)

    # Back to PyTorch3D's channels-last (N, H, W, 4) image layout.
    return jnp.transpose(out[:, :P]).reshape(N, H, W, 4)


def simple_shader_ref(pix_to_face, bary_coords, face_vert_colors, background_color):
    """Pure-JAX reference matching PyTorch3D interpolate_face_attributes + hard_rgb_blend."""
    pix0 = pix_to_face[..., 0]
    bary0 = bary_coords[..., 0, :]
    is_bg = pix0 < 0
    safe = jnp.where(is_bg, 0, pix0)
    gathered = face_vert_colors[safe]                                    # (N,H,W,3,3)
    texel = jnp.sum(bary0[..., :, None] * gathered, axis=-2)             # (N,H,W,3)
    rgb = jnp.where(is_bg[..., None], background_color, texel)
    alpha = jnp.where(is_bg, 0.0, 1.0)[..., None]
    return jnp.concatenate([rgb, alpha], axis=-1).astype(jnp.float32)


if __name__ == "__main__":
    key = jax.random.PRNGKey(0)
    k1, k2, k3, k4 = jax.random.split(key, 4)

    # Small synthetic mesh / rasterizer outputs (deterministic).
    N, H, W, K = 2, 16, 16, 2
    V, F = 24, 32

    verts_rgb = jax.random.uniform(k1, (V, 3), jnp.float32)              # per-vertex color
    faces = jax.random.randint(k2, (F, 3), 0, V, jnp.int32)              # mesh faces
    face_vert_colors = verts_rgb[faces]                                  # (F, 3, 3)

    # fragments: pix_to_face (-1 == background) and barycentric coords.
    pix_to_face = jax.random.randint(k3, (N, H, W, K), -1, F, jnp.int32)
    bary_raw = jax.random.uniform(k4, (N, H, W, K, 3), jnp.float32, 1e-3, 1.0)
    bary_coords = bary_raw / jnp.sum(bary_raw, axis=-1, keepdims=True)

    background_color = jnp.array([1.0, 1.0, 1.0], jnp.float32)           # BlendParams default

    images = simple_shader(pix_to_face, bary_coords, face_vert_colors, background_color)
    images = jax.block_until_ready(images)
    assert images.shape == (N, H, W, 4) and images.dtype == jnp.float32

    ref = simple_shader_ref(pix_to_face, bary_coords, face_vert_colors, background_color)
    np.testing.assert_allclose(np.asarray(images), np.asarray(ref), atol=1e-5, rtol=1e-5)

    print("KERNEL_OK")
</pallas_src>

<mosaic_0001>
module attributes {stable_mosaic.version = 11 : i64} {
  func.func @_shader_kernel(%arg0: i32, %arg1: memref<4x1024xf32, #tpu.memory_space<vmem>>, %arg2: memref<9x128xf32, #tpu.memory_space<vmem>>, %arg3: memref<3xf32, #tpu.memory_space<smem>>, %arg4: memref<4x1024xf32, #tpu.memory_space<vmem>>) attributes {dimension_semantics = [#tpu.dimension_semantics<parallel>], iteration_bounds = array<i64: 1>, scalar_prefetch = 0 : i64, scratch_operands = 0 : i64, tpu.core_type = #tpu.core_type<tc>, window_params = [{transform_indices = @transform_0, window_bounds = array<i64: 4, 1024>}, {pipeline_mode = #tpu.pipeline_mode<synchronous>, transform_indices = @transform_1, window_bounds = array<i64: 9, 128>}, {transform_indices = @transform_2, window_bounds = array<i64: 3>}, {transform_indices = @transform_3, window_bounds = array<i64: 4, 1024>}]} {
    %c0 = arith.constant 0 : index
    %c0_0 = arith.constant 0 : index
    %0 = vector.load %arg1[%c0, %c0_0] : memref<4x1024xf32, #tpu.memory_space<vmem>>, vector<3x1024xf32>
    %c3 = arith.constant 3 : index
    %c0_1 = arith.constant 0 : index
    %1 = vector.load %arg1[%c3, %c0_1] : memref<4x1024xf32, #tpu.memory_space<vmem>>, vector<1x1024xf32>
    %2 = tpu.bitcast %1 : vector<1x1024xf32> -> vector<1x1024xi32>
    %c0_i32 = arith.constant 0 : i32
    %3 = vector.broadcast %c0_i32 : i32 to vector<1x1024xi32>
    %4 = arith.cmpi slt, %2, %3 : vector<1x1024xi32>
    %c0_i32_2 = arith.constant 0 : i32
    %5 = vector.broadcast %c0_i32_2 : i32 to vector<1x1024xi32>
    %6 = arith.select %4, %5, %2 : vector<1x1024xi1>, vector<1x1024xi32>
    %7 = tpu.iota {dimensions = array<i32: 0>} : vector<128x1024xi32>
    %8 = vector.broadcast %6 : vector<1x1024xi32> to vector<128x1024xi32>
    %9 = arith.cmpi eq, %7, %8 : vector<128x1024xi32>
    %10 = arith.extui %9 : vector<128x1024xi1> to vector<128x1024xi32>
    %11 = arith.sitofp %10 : vector<128x1024xi32> to vector<128x1024xf32>
    %c0_3 = arith.constant 0 : index
    %c0_4 = arith.constant 0 : index
    %12 = vector.load %arg2[%c0_3, %c0_4] : memref<9x128xf32, #tpu.memory_space<vmem>>, vector<9x128xf32>
    %cst = arith.constant dense<0.000000e+00> : vector<9x1024xf32>
    %13 = tpu.matmul %12, %11, %cst {dimension_numbers = #tpu.dot_dimension_numbers<[1], [0], [0], [1], [0, 0, 1, 1], [], []>} : vector<9x128xf32>, vector<128x1024xf32>, vector<9x1024xf32> -> vector<9x1024xf32>
    %14 = vector.extract_strided_slice %0 {offsets = [0, 0], sizes = [1, 1024], strides = [1, 1]} : vector<3x1024xf32> to vector<1x1024xf32>
    %15 = vector.extract_strided_slice %13 {offsets = [0, 0], sizes = [3, 1024], strides = [1, 1]} : vector<9x1024xf32> to vector<3x1024xf32>
    %16 = vector.broadcast %14 : vector<1x1024xf32> to vector<3x1024xf32>
    %17 = arith.mulf %16, %15 : vector<3x1024xf32>
    %18 = vector.extract_strided_slice %0 {offsets = [1, 0], sizes = [1, 1024], strides = [1, 1]} : vector<3x1024xf32> to vector<1x1024xf32>
    %19 = vector.extract_strided_slice %13 {offsets = [3, 0], sizes = [3, 1024], strides = [1, 1]} : vector<9x1024xf32> to vector<3x1024xf32>
    %20 = vector.broadcast %18 : vector<1x1024xf32> to vector<3x1024xf32>
    %21 = arith.mulf %20, %19 : vector<3x1024xf32>
    %22 = arith.addf %17, %21 : vector<3x1024xf32>
    %23 = vector.extract_strided_slice %0 {offsets = [2, 0], sizes = [1, 1024], strides = [1, 1]} : vector<3x1024xf32> to vector<1x1024xf32>
    %24 = vector.extract_strided_slice %13 {offsets = [6, 0], sizes = [3, 1024], strides = [1, 1]} : vector<9x1024xf32> to vector<3x1024xf32>
    %25 = vector.broadcast %23 : vector<1x1024xf32> to vector<3x1024xf32>
    %26 = arith.mulf %25, %24 : vector<3x1024xf32>
    %27 = arith.addf %22, %26 : vector<3x1024xf32>
    %c0_5 = arith.constant 0 : index
    %28 = memref.load %arg3[%c0_5] : memref<3xf32, #tpu.memory_space<smem>>
    %29 = vector.extract_strided_slice %27 {offsets = [0, 0], sizes = [1, 1024], strides = [1, 1]} : vector<3x1024xf32> to vector<1x1024xf32>
    %30 = vector.broadcast %28 : f32 to vector<1x1024xf32>
    %31 = arith.select %4, %30, %29 : vector<1x1024xi1>, vector<1x1024xf32>
    %c1 = arith.constant 1 : index
    %32 = memref.load %arg3[%c1] : memref<3xf32, #tpu.memory_space<smem>>
    %33 = vector.extract_strided_slice %27 {offsets = [1, 0], sizes = [1, 1024], strides = [1, 1]} : vector<3x1024xf32> to vector<1x1024xf32>
    %34 = vector.broadcast %32 : f32 to vector<1x1024xf32>
    %35 = arith.select %4, %34, %33 : vector<1x1024xi1>, vector<1x1024xf32>
    %c2 = arith.constant 2 : index
    %36 = memref.load %arg3[%c2] : memref<3xf32, #tpu.memory_space<smem>>
    %37 = vector.extract_strided_slice %27 {offsets = [2, 0], sizes = [1, 1024], strides = [1, 1]} : vector<3x1024xf32> to vector<1x1024xf32>
    %38 = vector.broadcast %36 : f32 to vector<1x1024xf32>
    %39 = arith.select %4, %38, %37 : vector<1x1024xi1>, vector<1x1024xf32>
    %cst_6 = arith.constant 0.000000e+00 : f32
    %cst_7 = arith.constant 1.000000e+00 : f32
    %40 = vector.broadcast %cst_6 : f32 to vector<1x1024xf32>
    %41 = vector.broadcast %cst_7 : f32 to vector<1x1024xf32>
    %42 = arith.select %4, %40, %41 : vector<1x1024xi1>, vector<1x1024xf32>
    %43 = tpu.concatenate %31, %35, %39, %42 in 0 : vector<1x1024xf32>, vector<1x1024xf32>, vector<1x1024xf32>, vector<1x1024xf32> -> vector<4x1024xf32>
    %c0_8 = arith.constant 0 : index
    %c0_9 = arith.constant 0 : index
    %44 = vector.load %arg4[%c0_8, %c0_9] : memref<4x1024xf32, #tpu.memory_space<vmem>>, vector<4x1024xf32>
    tpu.vector_store %arg4[%c0_8, %c0_9], %43 {strides = array<i32>} : memref<4x1024xf32, #tpu.memory_space<vmem>>, vector<4x1024xf32>,
    return
  }
  func.func @transform_0(%arg0: i32) -> (i32, i32) {
    %c0_i32 = arith.constant 0 : i32
    %c0_i32_0 = arith.constant 0 : i32
    return %c0_i32, %arg0 : i32, i32
  }
  func.func @transform_1(%arg0: i32) -> (i32, i32) {
    %c0_i32 = arith.constant 0 : i32
    %c0_i32_0 = arith.constant 0 : i32
    %c0_i32_1 = arith.constant 0 : i32
    return %c0_i32, %c0_i32_0 : i32, i32
  }
  func.func @transform_2(%arg0: i32) -> i32 {
    %c0_i32 = arith.constant 0 : i32
    %c0_i32_0 = arith.constant 0 : i32
    return %c0_i32 : i32
  }
  func.func @transform_3(%arg0: i32) -> (i32, i32) {
    %c0_i32 = arith.constant 0 : i32
    %c0_i32_0 = arith.constant 0 : i32
    return %c0_i32, %arg0 : i32, i32
  }
}

</mosaic_0001>

<llo_original>
// kernel: tpu_custom_call.1
$region0: #{tpu_custom_call.1}
  #allocation0 [shape = 'u32[]', space=smem, size = 0x4, offset = 0x4, fixed_abs, tag = 'smem constant byte address 0x4 - core index']
  #allocation1 [shape = 'u32[72,128]{1,0:T(1,128)}', space=vmem, size = 0x9000, scoped, tag = 'internal scratch']
  %s0 = inlined_call_operand.hbm [shape: f32[4,1024], index: 0, kind: input, shape index: {}]
  %s1 = inlined_call_operand.hbm [shape: f32[9,128], index: 1, kind: input, shape index: {}]
  %s2 = inlined_call_operand.vmem [shape: f32[3], index: 2, kind: input, shape index: {}]
  %s3 = inlined_call_operand.hbm [shape: f32[4,1024], index: 3, kind: output, shape index: {}]
  %s4 = sld [smem:[#allocation0]]
  $region34: #{tpu_custom_call.1} parent=0
    _
  %s6 = ssub.s32 1, %s4
  %s7 = scalar_select 0, %s6, %s4
  $region1: #{tpu_custom_call.1} parent=0
    #allocation2 [shape = 'u8[16384]{0}', space=vmem, size = 0x4000, scoped, tag = 'input window, operand 0, single buffered']
    #allocation3 [shape = 's32[1]{0}', space=sflag, size = 0x4, scoped, tag = 'scoped memory for tpu_custom_call.1']
    #allocation4 [shape = 's32[1]{0}', space=sflag, size = 0x4, scoped, tag = 'scoped memory for tpu_custom_call.1']
    #allocation5 [shape = 's32[1]{0}', space=sflag, size = 0x4, scoped, tag = 'scoped memory for tpu_custom_call.1']
    #allocation6 [shape = 'u8[8192]{0}', space=vmem, size = 0x2000, scoped, tag = 'input window, operand 1, single buffered']
    #allocation7 [shape = 's32[1]{0}', space=sflag, size = 0x4, scoped, tag = 'scoped memory for tpu_custom_call.1']
    #allocation8 [shape = 'u8[512]{0}', space=smem, size = 0x200, scoped, tag = 'input window, operand 2, single buffered']
    #allocation9 [shape = 'u8[16384]{0}', space=vmem, size = 0x4000, scoped, tag = 'output window, operand 0, single buffered']
    %8 = vsyncpa [#allocation3], 0
    %9 = vsyncpa [#allocation7], 0
    %10 = vsyncpa [#allocation5], 0
    %11 = vsyncpa [#allocation4], 0
    // Predicated region
    $region2: #{tpu_custom_call.1} parent=1 // pred_check
      _
    $region3: #{tpu_custom_call.1} parent=1 // pred_check_branch
      %13 = sbr.rel (0) target = $region5
    $region4: #{tpu_custom_call.1} parent=1 // pred_region
      %15 = vsyncadd [#allocation3], 0
      %s17 = sshll.u32 %s0, 4
      %s18 = int_to_ptr.hbm [resolvable:$true] %s17
      %s19 = sshll.u32 [#allocation2], 4
      %s20 = int_to_ptr.vmem [resolvable:$true] %s19
      %22 = dma.hbm_to_vmem [thread:$0]  %s18, 512, %s20, [#allocation3]
    $region5: #{tpu_custom_call.1} parent=1 // pred_fallthru
      _
    // Predicated region
    $region6: #{tpu_custom_call.1} parent=1 // pred_check
      _
    $region7: #{tpu_custom_call.1} parent=1 // pred_check_branch
      %24 = sbr.rel (0) target = $region9
    $region8: #{tpu_custom_call.1} parent=1 // pred_region
      %26 = vsyncadd [#allocation7], 0
      %s27 = sshll.u32 %s1, 4
      %s28 = int_to_ptr.hbm [resolvable:$true] %s27
      %s29 = sshll.u32 [#allocation6], 4
      %s30 = int_to_ptr.vmem [resolvable:$true] %s29
      %35 = dma.hbm_to_vmem [thread:$0]  %s28, 256, %s30, [#allocation7], 128, 128, 8
    $region9: #{tpu_custom_call.1} parent=1 // pred_fallthru
      _
    // Predicated region
    $region10: #{tpu_custom_call.1} parent=1 // pred_check
      _
    $region11: #{tpu_custom_call.1} parent=1 // pred_check_branch
      %37 = sbr.rel (0) target = $region13
    $region12: #{tpu_custom_call.1} parent=1 // pred_region
      %39 = vsyncadd [#allocation5], 0
      %s41 = sshll.u32 %s2, 4
      %s42 = int_to_ptr.vmem [resolvable:$true] %s41
      %44 = dma.vmem_to_smem %s42, 16, [#allocation8], [#allocation5]
    $region13: #{tpu_custom_call.1} parent=1 // pred_fallthru
      _
    // Predicated region
    $region14: #{tpu_custom_call.1} parent=1 // pred_check
      _
    $region15: #{tpu_custom_call.1} parent=1 // pred_check_branch
      %46 = sbr.rel (0) target = $region17
    $region16: #{tpu_custom_call.1} parent=1 // pred_region
      %48 = dma.done [#allocation3], 512
    $region17: #{tpu_custom_call.1} parent=1 // pred_fallthru
      _
    // Predicated region
    $region18: #{tpu_custom_call.1} parent=1 // pred_check
      _
    $region19: #{tpu_custom_call.1} parent=1 // pred_check_branch
      %50 = sbr.rel (0) target = $region21
    $region20: #{tpu_custom_call.1} parent=1 // pred_region
      %52 = dma.done [#allocation7], 256
    $region21: #{tpu_custom_call.1} parent=1 // pred_fallthru
      _
    // Predicated region
    $region22: #{tpu_custom_call.1} parent=1 // pred_check
      _
    $region23: #{tpu_custom_call.1} parent=1 // pred_check_branch
      %54 = sbr.rel (0) target = $region25
    $region24: #{tpu_custom_call.1} parent=1 // pred_region
      %56 = dma.done [#allocation5], 16
    $region25: #{tpu_custom_call.1} parent=1 // pred_fallthru
      _
    %57 = sfence
    %v58 = vld [vmem:[#allocation2] sm:$0x77]
    %v59 = vld [vmem:[#allocation2 + $0x8] sm:$0x77]
    %v60 = vld [vmem:[#allocation2 + $0x10] sm:$0x77]
    %v61 = vld [vmem:[#allocation2 + $0x18] sm:$0x77]
    %s62 = scalar_lea.vmem [#allocation2], 3
    %v63 = vld [vmem:[%s62] ss:$4 sm:$0xff]
    %v65 = vperm.slane %v63, 0
    %v66 = vperm.slane %v63, 1
    %v67 = vperm.slane %v63, 2
    %v68 = vperm.slane %v63, 3
    %v69 = vperm.slane %v63, 4
    %v70 = vperm.slane %v63, 5
    %v71 = vperm.slane %v63, 6
    %v72 = vperm.slane %v63, 7
    %vm73 = vcmp.lt.s32.totalorder %v65, 0
    %vm74 = vcmp.lt.s32.totalorder %v66, 0
    %vm75 = vcmp.lt.s32.totalorder %v67, 0
    %vm76 = vcmp.lt.s32.totalorder %v68, 0
    %vm77 = vcmp.lt.s32.totalorder %v69, 0
    %vm78 = vcmp.lt.s32.totalorder %v70, 0
    %vm79 = vcmp.lt.s32.totalorder %v71, 0
    %vm80 = vcmp.lt.s32.totalorder %v72, 0
    %v81 = vsel %vm73, 0, %v65
    %v82 = vsel %vm74, 0, %v66
    %v83 = vsel %vm75, 0, %v67
    %v84 = vsel %vm76, 0, %v68
    %v85 = vsel %vm77, 0, %v69
    %v86 = vsel %vm78, 0, %v70
    %v87 = vsel %vm79, 0, %v71
    %v88 = vsel %vm80, 0, %v72
    %v89 = vlaneseq
    %v90 = vshrl.u32 %v89, 7
    %v91 = vadd.s32 %v90, 8
    %v92 = vadd.s32 %v90, 16
    %v93 = vadd.s32 %v90, 24
    %v94 = vadd.s32 %v90, 32
    %v95 = vadd.s32 %v90, 40
    %v96 = vadd.s32 %v90, 48
    %v97 = vadd.s32 %v90, 56
    %v98 = vadd.s32 %v90, 64
    %v99 = vadd.s32 %v90, 72
    %v100 = vadd.s32 %v90, 80
    %v101 = vadd.s32 %v90, 88
    %v102 = vadd.s32 %v90, 96
    %v103 = vadd.s32 %v90, 104
    %v104 = vadd.s32 %v90, 112
    %v105 = vadd.s32 %v90, 120
    %v106 = vperm.slane %v81, 0
    %v107 = vperm.slane %v82, 0
    %v108 = vperm.slane %v83, 0
    %v109 = vperm.slane %v84, 0
    %v110 = vperm.slane %v85, 0
    %v111 = vperm.slane %v86, 0
    %v112 = vperm.slane %v87, 0
    %v113 = vperm.slane %v88, 0
    %vm114 = vcmp.eq.s32.totalorder %v90, %v106
    %vm115 = vcmp.eq.s32.totalorder %v90, %v107
    %vm116 = vcmp.eq.s32.totalorder %v90, %v108
    %vm117 = vcmp.eq.s32.totalorder %v90, %v109
    %vm118 = vcmp.eq.s32.totalorder %v90, %v110
    %vm119 = vcmp.eq.s32.totalorder %v90, %v111
    %vm120 = vcmp.eq.s32.totalorder %v90, %v112
    %vm121 = vcmp.eq.s32.totalorder %v90, %v113
    %vm122 = vcmp.eq.s32.totalorder %v91, %v106
    %vm123 = vcmp.eq.s32.totalorder %v91, %v107
    %vm124 = vcmp.eq.s32.totalorder %v91, %v108
    %vm125 = vcmp.eq.s32.totalorder %v91, %v109
    %vm126 = vcmp.eq.s32.totalorder %v91, %v110
    %vm127 = vcmp.eq.s32.totalorder %v91, %v111
    %vm128 = vcmp.eq.s32.totalorder %v91, %v112
    %vm129 = vcmp.eq.s32.totalorder %v91, %v113
    %vm130 = vcmp.eq.s32.totalorder %v92, %v106
    %vm131 = vcmp.eq.s32.totalorder %v92, %v107
    %vm132 = vcmp.eq.s32.totalorder %v92, %v108
    %vm133 = vcmp.eq.s32.totalorder %v92, %v109
    %vm134 = vcmp.eq.s32.totalorder %v92, %v110
    %vm135 = vcmp.eq.s32.totalorder %v92, %v111
    %vm136 = vcmp.eq.s32.totalorder %v92, %v112
    %vm137 = vcmp.eq.s32.totalorder %v92, %v113
    %vm138 = vcmp.eq.s32.totalorder %v93, %v106
    %vm139 = vcmp.eq.s32.totalorder %v93, %v107
    %vm140 = vcmp.eq.s32.totalorder %v93, %v108
    %vm141 = vcmp.eq.s32.totalorder %v93, %v109
    %vm142 = vcmp.eq.s32.totalorder %v93, %v110
    %vm143 = vcmp.eq.s32.totalorder %v93, %v111
    %vm144 = vcmp.eq.s32.totalorder %v93, %v112
    %vm145 = vcmp.eq.s32.totalorder %v93, %v113
    %vm146 = vcmp.eq.s32.totalorder %v94, %v106
    %vm147 = vcmp.eq.s32.totalorder %v94, %v107
    %vm148 = vcmp.eq.s32.totalorder %v94, %v108
    %vm149 = vcmp.eq.s32.totalorder %v94, %v109
    %vm150 = vcmp.eq.s32.totalorder %v94, %v110
    %vm151 = vcmp.eq.s32.totalorder %v94, %v111
    %vm152 = vcmp.eq.s32.totalorder %v94, %v112
    %vm153 = vcmp.eq.s32.totalorder %v94, %v113
    %vm154 = vcmp.eq.s32.totalorder %v95, %v106
    %vm155 = vcmp.eq.s32.totalorder %v95, %v107
    %vm156 = vcmp.eq.s32.totalorder %v95, %v108
    %vm157 = vcmp.eq.s32.totalorder %v95, %v109
    %vm158 = vcmp.eq.s32.totalorder %v95, %v110
    %vm159 = vcmp.eq.s32.totalorder %v95, %v111
    %vm160 = vcmp.eq.s32.totalorder %v95, %v112
    %vm161 = vcmp.eq.s32.totalorder %v95, %v113
    %vm162 = vcmp.eq.s32.totalorder %v96, %v106
    %vm163 = vcmp.eq.s32.totalorder %v96, %v107
    %vm164 = vcmp.eq.s32.totalorder %v96, %v108
    %vm165 = vcmp.eq.s32.totalorder %v96, %v109
    %vm166 = vcmp.eq.s32.totalorder %v96, %v110
    %vm167 = vcmp.eq.s32.totalorder %v96, %v111
    %vm168 = vcmp.eq.s32.totalorder %v96, %v112
    %vm169 = vcmp.eq.s32.totalorder %v96, %v113
    %vm170 = vcmp.eq.s32.totalorder %v97, %v106
    %vm171 = vcmp.eq.s32.totalorder %v97, %v107
    %vm172 = vcmp.eq.s32.totalorder %v97, %v108
    %vm173 = vcmp.eq.s32.totalorder %v97, %v109
    %vm174 = vcmp.eq.s32.totalorder %v97, %v110
    %vm175 = vcmp.eq.s32.totalorder %v97, %v111
    %vm176 = vcmp.eq.s32.totalorder %v97, %v112
    %vm177 = vcmp.eq.s32.totalorder %v97, %v113
    %vm178 = vcmp.eq.s32.totalorder %v98, %v106
    %vm179 = vcmp.eq.s32.totalorder %v98, %v107
    %vm180 = vcmp.eq.s32.totalorder %v98, %v108
    %vm181 = vcmp.eq.s32.totalorder %v98, %v109
    %vm182 = vcmp.eq.s32.totalorder %v98, %v110
    %vm183 = vcmp.eq.s32.totalorder %v98, %v111
    %vm184 = vcmp.eq.s32.totalorder %v98, %v112
    %vm185 = vcmp.eq.s32.totalorder %v98, %v113
    %vm186 = vcmp.eq.s32.totalorder %v99, %v106
    %vm187 = vcmp.eq.s32.totalorder %v99, %v107
    %vm188 = vcmp.eq.s32.totalorder %v99, %v108
    %vm189 = vcmp.eq.s32.totalorder %v99, %v109
    %vm190 = vcmp.eq.s32.totalorder %v99, %v110
    %vm191 = vcmp.eq.s32.totalorder %v99, %v111
    %vm192 = vcmp.eq.s32.totalorder %v99, %v112
    %vm193 = vcmp.eq.s32.totalorder %v99, %v113
    %vm194 = vcmp.eq.s32.totalorder %v100, %v106
    %vm195 = vcmp.eq.s32.totalorder %v100, %v107
    %vm196 = vcmp.eq.s32.totalorder %v100, %v108
    %vm197 = vcmp.eq.s32.totalorder %v100, %v109
    %vm198 = vcmp.eq.s32.totalorder %v100, %v110
    %vm199 = vcmp.eq.s32.totalorder %v100, %v111
    %vm200 = vcmp.eq.s32.totalorder %v100, %v112
    %vm201 = vcmp.eq.s32.totalorder %v100, %v113
    %vm202 = vcmp.eq.s32.totalorder %v101, %v106
    %vm203 = vcmp.eq.s32.totalorder %v101, %v107
    %vm204 = vcmp.eq.s32.totalorder %v101, %v108
    %vm205 = vcmp.eq.s32.totalorder %v101, %v109
    %vm206 = vcmp.eq.s32.totalorder %v101, %v110
    %vm207 = vcmp.eq.s32.totalorder %v101, %v111
    %vm208 = vcmp.eq.s32.totalorder %v101, %v112
    %vm209 = vcmp.eq.s32.totalorder %v101, %v113
    %vm210 = vcmp.eq.s32.totalorder %v102, %v106
    %vm211 = vcmp.eq.s32.totalorder %v102, %v107
    %vm212 = vcmp.eq.s32.totalorder %v102, %v108
    %vm213 = vcmp.eq.s32.totalorder %v102, %v109
    %vm214 = vcmp.eq.s32.totalorder %v102, %v110
    %vm215 = vcmp.eq.s32.totalorder %v102, %v111
    %vm216 = vcmp.eq.s32.totalorder %v102, %v112
    %vm217 = vcmp.eq.s32.totalorder %v102, %v113
    %vm218 = vcmp.eq.s32.totalorder %v103, %v106
    %vm219 = vcmp.eq.s32.totalorder %v103, %v107
    %vm220 = vcmp.eq.s32.totalorder %v103, %v108
    %vm221 = vcmp.eq.s32.totalorder %v103, %v109
    %vm222 = vcmp.eq.s32.totalorder %v103, %v110
    %vm223 = vcmp.eq.s32.totalorder %v103, %v111
    %vm224 = vcmp.eq.s32.totalorder %v103, %v112
    %vm225 = vcmp.eq.s32.totalorder %v103, %v113
    %vm226 = vcmp.eq.s32.totalorder %v104, %v106
    %vm227 = vcmp.eq.s32.totalorder %v104, %v107
    %vm228 = vcmp.eq.s32.totalorder %v104, %v108
    %vm229 = vcmp.eq.s32.totalorder %v104, %v109
    %vm230 = vcmp.eq.s32.totalorder %v104, %v110
    %vm231 = vcmp.eq.s32.totalorder %v104, %v111
    %vm232 = vcmp.eq.s32.totalorder %v104, %v112
    %vm233 = vcmp.eq.s32.totalorder %v104, %v113
    %vm234 = vcmp.eq.s32.totalorder %v105, %v106
    %vm235 = vcmp.eq.s32.totalorder %v105, %v107
    %vm236 = vcmp.eq.s32.totalorder %v105, %v108
    %vm237 = vcmp.eq.s32.totalorder %v105, %v109
    %vm238 = vcmp.eq.s32.totalorder %v105, %v110
    %vm239 = vcmp.eq.s32.totalorder %v105, %v111
    %vm240 = vcmp.eq.s32.totalorder %v105, %v112
    %vm241 = vcmp.eq.s32.totalorder %v105, %v113
    %v242 = vsel %vm114, 1, 0
    %v243 = vsel %vm115, 1, 0
    %v244 = vsel %vm116, 1, 0
    %v245 = vsel %vm117, 1, 0
    %v246 = vsel %vm118, 1, 0
    %v247 = vsel %vm119, 1, 0
    %v248 = vsel %vm120, 1, 0
    %v249 = vsel %vm121, 1, 0
    %v250 = vsel %vm122, 1, 0
    %v251 = vsel %vm123, 1, 0
    %v252 = vsel %vm124, 1, 0
    %v253 = vsel %vm125, 1, 0
    %v254 = vsel %vm126, 1, 0
    %v255 = vsel %vm127, 1, 0
    %v256 = vsel %vm128, 1, 0
    %v257 = vsel %vm129, 1, 0
    %v258 = vsel %vm130, 1, 0
    %v259 = vsel %vm131, 1, 0
    %v260 = vsel %vm132, 1, 0
    %v261 = vsel %vm133, 1, 0
    %v262 = vsel %vm134, 1, 0
    %v263 = vsel %vm135, 1, 0
    %v264 = vsel %vm136, 1, 0
    %v265 = vsel %vm137, 1, 0
    %v266 = vsel %vm138, 1, 0
    %v267 = vsel %vm139, 1, 0
    %v268 = vsel %vm140, 1, 0
    %v269 = vsel %vm141, 1, 0
    %v270 = vsel %vm142, 1, 0
    %v271 = vsel %vm143, 1, 0
    %v272 = vsel %vm144, 1, 0
    %v273 = vsel %vm145, 1, 0
    %v274 = vsel %vm146, 1, 0
    %v275 = vsel %vm147, 1, 0
    %v276 = vsel %vm148, 1, 0
    %v277 = vsel %vm149, 1, 0
    %v278 = vsel %vm150, 1, 0
    %v279 = vsel %vm151, 1, 0
    %v280 = vsel %vm152, 1, 0
    %v281 = vsel %vm153, 1, 0
    %v282 = vsel %vm154, 1, 0
    %v283 = vsel %vm155, 1, 0
    %v284 = vsel %vm156, 1, 0
    %v285 = vsel %vm157, 1, 0
    %v286 = vsel %vm158, 1, 0
    %v287 = vsel %vm159, 1, 0
    %v288 = vsel %vm160, 1, 0
    %v289 = vsel %vm161, 1, 0
    %v290 = vsel %vm162, 1, 0
    %v291 = vsel %vm163, 1, 0
    %v292 = vsel %vm164, 1, 0
    %v293 = vsel %vm165, 1, 0
    %v294 = vsel %vm166, 1, 0
    %v295 = vsel %vm167, 1, 0
    %v296 = vsel %vm168, 1, 0
    %v297 = vsel %vm169, 1, 0
    %v298 = vsel %vm170, 1, 0
    %v299 = vsel %vm171, 1, 0
    %v300 = vsel %vm172, 1, 0
    %v301 = vsel %vm173, 1, 0
    %v302 = vsel %vm174, 1, 0
    %v303 = vsel %vm175, 1, 0
    %v304 = vsel %vm176, 1, 0
    %v305 = vsel %vm177, 1, 0
    %v306 = vsel %vm178, 1, 0
    %v307 = vsel %vm179, 1, 0
    %v308 = vsel %vm180, 1, 0
    %v309 = vsel %vm181, 1, 0
    %v310 = vsel %vm182, 1, 0
    %v311 = vsel %vm183, 1, 0
    %v312 = vsel %vm184, 1, 0
    %v313 = vsel %vm185, 1, 0
    %v314 = vsel %vm186, 1, 0
    %v315 = vsel %vm187, 1, 0
    %v316 = vsel %vm188, 1, 0
    %v317 = vsel %vm189, 1, 0
    %v318 = vsel %vm190, 1, 0
    %v319 = vsel %vm191, 1, 0
    %v320 = vsel %vm192, 1, 0
    %v321 = vsel %vm193, 1, 0
    %v322 = vsel %vm194, 1, 0
    %v323 = vsel %vm195, 1, 0
    %v324 = vsel %vm196, 1, 0
    %v325 = vsel %vm197, 1, 0
    %v326 = vsel %vm198, 1, 0
    %v327 = vsel %vm199, 1, 0
    %v328 = vsel %vm200, 1, 0
    %v329 = vsel %vm201, 1, 0
    %v330 = vsel %vm202, 1, 0
    %v331 = vsel %vm203, 1, 0
    %v332 = vsel %vm204, 1, 0
    %v333 = vsel %vm205, 1, 0
    %v334 = vsel %vm206, 1, 0
    %v335 = vsel %vm207, 1, 0
    %v336 = vsel %vm208, 1, 0
    %v337 = vsel %vm209, 1, 0
    %v338 = vsel %vm210, 1, 0
    %v339 = vsel %vm211, 1, 0
    %v340 = vsel %vm212, 1, 0
    %v341 = vsel %vm213, 1, 0
    %v342 = vsel %vm214, 1, 0
    %v343 = vsel %vm215, 1, 0
    %v344 = vsel %vm216, 1, 0
    %v345 = vsel %vm217, 1, 0
    %v346 = vsel %vm218, 1, 0
    %v347 = vsel %vm219, 1, 0
    %v348 = vsel %vm220, 1, 0
    %v349 = vsel %vm221, 1, 0
    %v350 = vsel %vm222, 1, 0
    %v351 = vsel %vm223, 1, 0
    %v352 = vsel %vm224, 1, 0
    %v353 = vsel %vm225, 1, 0
    %v354 = vsel %vm226, 1, 0
    %v355 = vsel %vm227, 1, 0
    %v356 = vsel %vm228, 1, 0
    %v357 = vsel %vm229, 1, 0
    %v358 = vsel %vm230, 1, 0
    %v359 = vsel %vm231, 1, 0
    %v360 = vsel %vm232, 1, 0
    %v361 = vsel %vm233, 1, 0
    %v362 = vsel %vm234, 1, 0
    %v363 = vsel %vm235, 1, 0
    %v364 = vsel %vm236, 1, 0
    %v365 = vsel %vm237, 1, 0
    %v366 = vsel %vm238, 1, 0
    %v367 = vsel %vm239, 1, 0
    %v368 = vsel %vm240, 1, 0
    %v369 = vsel %vm241, 1, 0
    %v370 = vcvt.s32.f32 %v242
    %v371 = vcvt.s32.f32 %v243
    %v372 = vcvt.s32.f32 %v244
    %v373 = vcvt.s32.f32 %v245
    %v374 = vcvt.s32.f32 %v246
    %v375 = vcvt.s32.f32 %v247
    %v376 = vcvt.s32.f32 %v248
    %v377 = vcvt.s32.f32 %v249
    %v378 = vcvt.s32.f32 %v250
    %v379 = vcvt.s32.f32 %v251
    %v380 = vcvt.s32.f32 %v252
    %v381 = vcvt.s32.f32 %v253
    %v382 = vcvt.s32.f32 %v254
    %v383 = vcvt.s32.f32 %v255
    %v384 = vcvt.s32.f32 %v256
    %v385 = vcvt.s32.f32 %v257
    %v386 = vcvt.s32.f32 %v258
    %v387 = vcvt.s32.f32 %v259
    %v388 = vcvt.s32.f32 %v260
    %v389 = vcvt.s32.f32 %v261
    %v390 = vcvt.s32.f32 %v262
    %v391 = vcvt.s32.f32 %v263
    %v392 = vcvt.s32.f32 %v264
    %v393 = vcvt.s32.f32 %v265
    %v394 = vcvt.s32.f32 %v266
    %v395 = vcvt.s32.f32 %v267
    %v396 = vcvt.s32.f32 %v268
    %v397 = vcvt.s32.f32 %v269
    %v398 = vcvt.s32.f32 %v270
    %v399 = vcvt.s32.f32 %v271
    %v400 = vcvt.s32.f32 %v272
    %v401 = vcvt.s32.f32 %v273
    %v402 = vcvt.s32.f32 %v274
    %v403 = vcvt.s32.f32 %v275
    %v404 = vcvt.s32.f32 %v276
    %v405 = vcvt.s32.f32 %v277
    %v406 = vcvt.s32.f32 %v278
    %v407 = vcvt.s32.f32 %v279
    %v408 = vcvt.s32.f32 %v280
    %v409 = vcvt.s32.f32 %v281
    %v410 = vcvt.s32.f32 %v282
    %v411 = vcvt.s32.f32 %v283
    %v412 = vcvt.s32.f32 %v284
    %v413 = vcvt.s32.f32 %v285
    %v414 = vcvt.s32.f32 %v286
    %v415 = vcvt.s32.f32 %v287
    %v416 = vcvt.s32.f32 %v288
    %v417 = vcvt.s32.f32 %v289
    %v418 = vcvt.s32.f32 %v290
    %v419 = vcvt.s32.f32 %v291
    %v420 = vcvt.s32.f32 %v292
    %v421 = vcvt.s32.f32 %v293
    %v422 = vcvt.s32.f32 %v294
    %v423 = vcvt.s32.f32 %v295
    %v424 = vcvt.s32.f32 %v296
    %v425 = vcvt.s32.f32 %v297
    %v426 = vcvt.s32.f32 %v298
    %v427 = vcvt.s32.f32 %v299
    %v428 = vcvt.s32.f32 %v300
    %v429 = vcvt.s32.f32 %v301
    %v430 = vcvt.s32.f32 %v302
    %v431 = vcvt.s32.f32 %v303
    %v432 = vcvt.s32.f32 %v304
    %v433 = vcvt.s32.f32 %v305
    %v434 = vcvt.s32.f32 %v306
    %v435 = vcvt.s32.f32 %v307
    %v436 = vcvt.s32.f32 %v308
    %v437 = vcvt.s32.f32 %v309
    %v438 = vcvt.s32.f32 %v310
    %v439 = vcvt.s32.f32 %v311
    %v440 = vcvt.s32.f32 %v312
    %v441 = vcvt.s32.f32 %v313
    %v442 = vcvt.s32.f32 %v314
    %v443 = vcvt.s32.f32 %v315
    %v444 = vcvt.s32.f32 %v316
    %v445 = vcvt.s32.f32 %v317
    %v446 = vcvt.s32.f32 %v318
    %v447 = vcvt.s32.f32 %v319
    %v448 = vcvt.s32.f32 %v320
    %v449 = vcvt.s32.f32 %v321
    %v450 = vcvt.s32.f32 %v322
    %v451 = vcvt.s32.f32 %v323
    %v452 = vcvt.s32.f32 %v324
    %v453 = vcvt.s32.f32 %v325
    %v454 = vcvt.s32.f32 %v326
    %v455 = vcvt.s32.f32 %v327
    %v456 = vcvt.s32.f32 %v328
    %v457 = vcvt.s32.f32 %v329
    %v458 = vcvt.s32.f32 %v330
    %v459 = vcvt.s32.f32 %v331
    %v460 = vcvt.s32.f32 %v332
    %v461 = vcvt.s32.f32 %v333
    %v462 = vcvt.s32.f32 %v334
    %v463 = vcvt.s32.f32 %v335
    %v464 = vcvt.s32.f32 %v336
    %v465 = vcvt.s32.f32 %v337
    %v466 = vcvt.s32.f32 %v338
    %v467 = vcvt.s32.f32 %v339
    %v468 = vcvt.s32.f32 %v340
    %v469 = vcvt.s32.f32 %v341
    %v470 = vcvt.s32.f32 %v342
    %v471 = vcvt.s32.f32 %v343
    %v472 = vcvt.s32.f32 %v344
    %v473 = vcvt.s32.f32 %v345
    %v474 = vcvt.s32.f32 %v346
    %v475 = vcvt.s32.f32 %v347
    %v476 = vcvt.s32.f32 %v348
    %v477 = vcvt.s32.f32 %v349
    %v478 = vcvt.s32.f32 %v350
    %v479 = vcvt.s32.f32 %v351
    %v480 = vcvt.s32.f32 %v352
    %v481 = vcvt.s32.f32 %v353
    %v482 = vcvt.s32.f32 %v354
    %v483 = vcvt.s32.f32 %v355
    %v484 = vcvt.s32.f32 %v356
    %v485 = vcvt.s32.f32 %v357
    %v486 = vcvt.s32.f32 %v358
    %v487 = vcvt.s32.f32 %v359
    %v488 = vcvt.s32.f32 %v360
    %v489 = vcvt.s32.f32 %v361
    %v490 = vcvt.s32.f32 %v362
    %v491 = vcvt.s32.f32 %v363
    %v492 = vcvt.s32.f32 %v364
    %v493 = vcvt.s32.f32 %v365
    %v494 = vcvt.s32.f32 %v366
    %v495 = vcvt.s32.f32 %v367
    %v496 = vcvt.s32.f32 %v368
    %v497 = vcvt.s32.f32 %v369
    %v498 = vld [vmem:[#allocation6] sm:$0xff]
    %v499 = vld [vmem:[#allocation6 + $0x8] sm:$0x1]
    %500 = vmatpush.msra.mxu0 %v490
    %501 = vmatpush.msra.mxu0 %v482
    %502 = vmatpush.msra.mxu0 %v474
    %503 = vmatpush.msra.mxu0 %v466
    %504 = vmatpush.msra.mxu0 %v458
    %505 = vmatpush.msra.mxu0 %v450
    %506 = vmatpush.msra.mxu0 %v442
    %507 = vmatpush.msra.mxu0 %v434
    %508 = vmatpush.msra.mxu0 %v426
    %509 = vmatpush.msra.mxu0 %v418
    %510 = vmatpush.msra.mxu0 %v410
    %511 = vmatpush.msra.mxu0 %v402
    %512 = vmatpush.msra.mxu0 %v394
    %513 = vmatpush.msra.mxu0 %v386
    %514 = vmatpush.msra.mxu0 %v378
    %515 = vmatpush.msra.mxu0 %v370
    %516 = vmatmul.f32.gmra.mxu0 %v498
    %v517 = vpop.f32.mrf.mxu0
    %v518 = vadd.f32 0.0, %v517
    %519 = vmatmul.f32.gmra.mxu0 %v499
    %v520 = vpop.f32.mrf.mxu0
    %v521 = vadd.f32 0.0, %v520
    %522 = vdwg.mxu0
    %523 = vmatpush.msra.mxu0 %v491
    %524 = vmatpush.msra.mxu0 %v483
    %525 = vmatpush.msra.mxu0 %v475
    %526 = vmatpush.msra.mxu0 %v467
    %527 = vmatpush.msra.mxu0 %v459
    %528 = vmatpush.msra.mxu0 %v451
    %529 = vmatpush.msra.mxu0 %v443
    %530 = vmatpush.msra.mxu0 %v435
    %531 = vmatpush.msra.mxu0 %v427
    %532 = vmatpush.msra.mxu0 %v419
    %533 = vmatpush.msra.mxu0 %v411
    %534 = vmatpush.msra.mxu0 %v403
    %535 = vmatpush.msra.mxu0 %v395
    %536 = vmatpush.msra.mxu0 %v387
    %537 = vmatpush.msra.mxu0 %v379
    %538 = vmatpush.msra.mxu0 %v371
    %539 = vmatmul.f32.gmra.mxu0 %v498
    %v540 = vpop.f32.mrf.mxu0
    %v541 = vadd.f32 0.0, %v540
    %542 = vmatmul.f32.gmra.mxu0 %v499
    %v543 = vpop.f32.mrf.mxu0
    %v544 = vadd.f32 0.0, %v543
    %545 = vdwg.mxu0
    %546 = vmatpush.msra.mxu0 %v492
    %547 = vmatpush.msra.mxu0 %v484
    %548 = vmatpush.msra.mxu0 %v476
    %549 = vmatpush.msra.mxu0 %v468
    %550 = vmatpush.msra.mxu0 %v460
    %551 = vmatpush.msra.mxu0 %v452
    %552 = vmatpush.msra.mxu0 %v444
    %553 = vmatpush.msra.mxu0 %v436
    %554 = vmatpush.msra.mxu0 %v428
    %555 = vmatpush.msra.mxu0 %v420
    %556 = vmatpush.msra.mxu0 %v412
    %557 = vmatpush.msra.mxu0 %v404
    %558 = vmatpush.msra.mxu0 %v396
    %559 = vmatpush.msra.mxu0 %v388
    %560 = vmatpush.msra.mxu0 %v380
    %561 = vmatpush.msra.mxu0 %v372
    %562 = vmatmul.f32.gmra.mxu0 %v498
    %v563 = vpop.f32.mrf.mxu0
    %v564 = vadd.f32 0.0, %v563
    %565 = vmatmul.f32.gmra.mxu0 %v499
    %v566 = vpop.f32.mrf.mxu0
    %v567 = vadd.f32 0.0, %v566
    %568 = vdwg.mxu0
    %569 = vmatpush.msra.mxu0 %v493
    %570 = vmatpush.msra.mxu0 %v485
    %571 = vmatpush.msra.mxu0 %v477
    %572 = vmatpush.msra.mxu0 %v469
    %573 = vmatpush.msra.mxu0 %v461
    %574 = vmatpush.msra.mxu0 %v453
    %575 = vmatpush.msra.mxu0 %v445
    %576 = vmatpush.msra.mxu0 %v437
    %577 = vmatpush.msra.mxu0 %v429
    %578 = vmatpush.msra.mxu0 %v421
    %579 = vmatpush.msra.mxu0 %v413
    %580 = vmatpush.msra.mxu0 %v405
    %581 = vmatpush.msra.mxu0 %v397
    %582 = vmatpush.msra.mxu0 %v389
    %583 = vmatpush.msra.mxu0 %v381
    %584 = vmatpush.msra.mxu0 %v373
    %585 = vmatmul.f32.gmra.mxu0 %v498
    %v586 = vpop.f32.mrf.mxu0
    %v587 = vadd.f32 0.0, %v586
    %588 = vmatmul.f32.gmra.mxu0 %v499
    %v589 = vpop.f32.mrf.mxu0
    %v590 = vadd.f32 0.0, %v589
    %591 = vdwg.mxu0
    %592 = vmatpush.msra.mxu0 %v494
    %593 = vmatpush.msra.mxu0 %v486
    %594 = vmatpush.msra.mxu0 %v478
    %595 = vmatpush.msra.mxu0 %v470
    %596 = vmatpush.msra.mxu0 %v462
    %597 = vmatpush.msra.mxu0 %v454
    %598 = vmatpush.msra.mxu0 %v446
    %599 = vmatpush.msra.mxu0 %v438
    %600 = vmatpush.msra.mxu0 %v430
    %601 = vmatpush.msra.mxu0 %v422
    %602 = vmatpush.msra.mxu0 %v414
    %603 = vmatpush.msra.mxu0 %v406
    %604 = vmatpush.msra.mxu0 %v398
    %605 = vmatpush.msra.mxu0 %v390
    %606 = vmatpush.msra.mxu0 %v382
    %607 = vmatpush.msra.mxu0 %v374
    %608 = vmatmul.f32.gmra.mxu0 %v498
    %v609 = vpop.f32.mrf.mxu0
    %v610 = vadd.f32 0.0, %v609
    %611 = vmatmul.f32.gmra.mxu0 %v499
    %v612 = vpop.f32.mrf.mxu0
    %v613 = vadd.f32 0.0, %v612
    %614 = vdwg.mxu0
    %615 = vmatpush.msra.mxu0 %v495
    %616 = vmatpush.msra.mxu0 %v487
    %617 = vmatpush.msra.mxu0 %v479
    %618 = vmatpush.msra.mxu0 %v471
    %619 = vmatpush.msra.mxu0 %v463
    %620 = vmatpush.msra.mxu0 %v455
    %621 = vmatpush.msra.mxu0 %v447
    %622 = vmatpush.msra.mxu0 %v439
    %623 = vmatpush.msra.mxu0 %v431
    %624 = vmatpush.msra.mxu0 %v423
    %625 = vmatpush.msra.mxu0 %v415
    %626 = vmatpush.msra.mxu0 %v407
    %627 = vmatpush.msra.mxu0 %v399
    %628 = vmatpush.msra.mxu0 %v391
    %629 = vmatpush.msra.mxu0 %v383
    %630 = vmatpush.msra.mxu0 %v375
    %631 = vmatmul.f32.gmra.mxu0 %v498
    %v632 = vpop.f32.mrf.mxu0
    %v633 = vadd.f32 0.0, %v632
    %634 = vmatmul.f32.gmra.mxu0 %v499
    %v635 = vpop.f32.mrf.mxu0
    %v636 = vadd.f32 0.0, %v635
    %637 = vdwg.mxu0
    %638 = vmatpush.msra.mxu0 %v496
    %639 = vmatpush.msra.mxu0 %v488
    %640 = vmatpush.msra.mxu0 %v480
    %641 = vmatpush.msra.mxu0 %v472
    %642 = vmatpush.msra.mxu0 %v464
    %643 = vmatpush.msra.mxu0 %v456
    %644 = vmatpush.msra.mxu0 %v448
    %645 = vmatpush.msra.mxu0 %v440
    %646 = vmatpush.msra.mxu0 %v432
    %647 = vmatpush.msra.mxu0 %v424
    %648 = vmatpush.msra.mxu0 %v416
    %649 = vmatpush.msra.mxu0 %v408
    %650 = vmatpush.msra.mxu0 %v400
    %651 = vmatpush.msra.mxu0 %v392
    %652 = vmatpush.msra.mxu0 %v384
    %653 = vmatpush.msra.mxu0 %v376
    %654 = vmatmul.f32.gmra.mxu0 %v498
    %v655 = vpop.f32.mrf.mxu0
    %v656 = vadd.f32 0.0, %v655
    %657 = vmatmul.f32.gmra.mxu0 %v499
    %v658 = vpop.f32.mrf.mxu0
    %v659 = vadd.f32 0.0, %v658
    %660 = vdwg.mxu0
    %661 = vmatpush.msra.mxu0 %v497
    %662 = vmatpush.msra.mxu0 %v489
    %663 = vmatpush.msra.mxu0 %v481
    %664 = vmatpush.msra.mxu0 %v473
    %665 = vmatpush.msra.mxu0 %v465
    %666 = vmatpush.msra.mxu0 %v457
    %667 = vmatpush.msra.mxu0 %v449
    %668 = vmatpush.msra.mxu0 %v441
    %669 = vmatpush.msra.mxu0 %v433
    %670 = vmatpush.msra.mxu0 %v425
    %671 = vmatpush.msra.mxu0 %v417
    %672 = vmatpush.msra.mxu0 %v409
    %673 = vmatpush.msra.mxu0 %v401
    %674 = vmatpush.msra.mxu0 %v393
    %675 = vmatpush.msra.mxu0 %v385
    %676 = vmatpush.msra.mxu0 %v377
    %677 = vmatmul.f32.gmra.mxu0 %v498
    %v678 = vpop.f32.mrf.mxu0
    %v679 = vadd.f32 0.0, %v678
    %680 = vmatmul.f32.gmra.mxu0 %v499
    %v681 = vpop.f32.mrf.mxu0
    %v682 = vadd.f32 0.0, %v681
    %683 = vdwg.mxu0
    %v688 = vperm.slane %v58, 0
    %v689 = vperm.slane %v58, 4
    %v690 = vperm.slane %v59, 0
    %v691 = vperm.slane %v59, 4
    %v692 = vperm.slane %v60, 0
    %v693 = vperm.slane %v60, 4
    %v694 = vperm.slane %v61, 0
    %v695 = vperm.slane %v61, 4
    %v704 = vperm.slane %v688, 0
    %v705 = vperm.slane %v689, 0
    %v706 = vperm.slane %v690, 0
    %v707 = vperm.slane %v691, 0
    %v708 = vperm.slane %v692, 0
    %v709 = vperm.slane %v693, 0
    %v710 = vperm.slane %v694, 0
    %v711 = vperm.slane %v695, 0
    %v712 = vmul.f32 %v704, %v518
    %v713 = vmul.f32 %v705, %v541
    %v714 = vmul.f32 %v706, %v564
    %v715 = vmul.f32 %v707, %v587
    %v716 = vmul.f32 %v708, %v610
    %v717 = vmul.f32 %v709, %v633
    %v718 = vmul.f32 %v710, %v656
    %v719 = vmul.f32 %v711, %v679
    %v720 = vperm.slane %v58, 1
    %v721 = vperm.slane %v58, 5
    %v722 = vperm.slane %v59, 1
    %v723 = vperm.slane %v59, 5
    %v724 = vperm.slane %v60, 1
    %v725 = vperm.slane %v60, 5
    %v726 = vperm.slane %v61, 1
    %v727 = vperm.slane %v61, 5
    %v736 = vperm.slane %v720, 1
    %v737 = vperm.slane %v721, 1
    %v738 = vperm.slane %v722, 1
    %v739 = vperm.slane %v723, 1
    %v740 = vperm.slane %v724, 1
    %v741 = vperm.slane %v725, 1
    %v742 = vperm.slane %v726, 1
    %v743 = vperm.slane %v727, 1
    %v744 = vmul.f32 %v736, %v518
    %v745 = vmul.f32 %v737, %v541
    %v746 = vmul.f32 %v738, %v564
    %v747 = vmul.f32 %v739, %v587
    %v748 = vmul.f32 %v740, %v610
    %v749 = vmul.f32 %v741, %v633
    %v750 = vmul.f32 %v742, %v656
    %v751 = vmul.f32 %v743, %v679
    %v760 = vrot.slane %v744, 3
    %v761 = vrot.slane %v745, 3
    %v762 = vrot.slane %v746, 3
    %v763 = vrot.slane %v747, 3
    %v764 = vrot.slane %v748, 3
    %v765 = vrot.slane %v749, 3
    %v766 = vrot.slane %v750, 3
    %v767 = vrot.slane %v751, 3
    %v776 = vadd.f32 %v712, %v760
    %v777 = vadd.f32 %v713, %v761
    %v778 = vadd.f32 %v714, %v762
    %v779 = vadd.f32 %v715, %v763
    %v780 = vadd.f32 %v716, %v764
    %v781 = vadd.f32 %v717, %v765
    %v782 = vadd.f32 %v718, %v766
    %v783 = vadd.f32 %v719, %v767
    %v784 = vperm.slane %v58, 2
    %v785 = vperm.slane %v58, 6
    %v786 = vperm.slane %v59, 2
    %v787 = vperm.slane %v59, 6
    %v788 = vperm.slane %v60, 2
    %v789 = vperm.slane %v60, 6
    %v790 = vperm.slane %v61, 2
    %v791 = vperm.slane %v61, 6
    %v800 = vperm.slane %v784, 2
    %v801 = vperm.slane %v785, 2
    %v802 = vperm.slane %v786, 2
    %v803 = vperm.slane %v787, 2
    %v804 = vperm.slane %v788, 2
    %v805 = vperm.slane %v789, 2
    %v806 = vperm.slane %v790, 2
    %v807 = vperm.slane %v791, 2
    %v808 = vmul.f32 %v800, %v518
    %v809 = vmul.f32 %v801, %v541
    %v810 = vmul.f32 %v802, %v564
    %v811 = vmul.f32 %v803, %v587
    %v812 = vmul.f32 %v804, %v610
    %v813 = vmul.f32 %v805, %v633
    %v814 = vmul.f32 %v806, %v656
    %v815 = vmul.f32 %v807, %v679
    %v816 = vmul.f32 %v800, %v521
    %v817 = vmul.f32 %v801, %v544
    %v818 = vmul.f32 %v802, %v567
    %v819 = vmul.f32 %v803, %v590
    %v820 = vmul.f32 %v804, %v613
    %v821 = vmul.f32 %v805, %v636
    %v822 = vmul.f32 %v806, %v659
    %v823 = vmul.f32 %v807, %v682
    %vm840 = vcmask 1041408
    %v841 = vrot.slane %v808, 6
    %v842 = vrot.slane %v816, 6
    %v843 = vsel %vm840, %v841, %v842
    %v844 = vrot.slane %v809, 6
    %v845 = vrot.slane %v817, 6
    %v846 = vsel %vm840, %v844, %v845
    %v847 = vrot.slane %v810, 6
    %v848 = vrot.slane %v818, 6
    %v849 = vsel %vm840, %v847, %v848
    %v850 = vrot.slane %v811, 6
    %v851 = vrot.slane %v819, 6
    %v852 = vsel %vm840, %v850, %v851
    %v853 = vrot.slane %v812, 6
    %v854 = vrot.slane %v820, 6
    %v855 = vsel %vm840, %v853, %v854
    %v856 = vrot.slane %v813, 6
    %v857 = vrot.slane %v821, 6
    %v858 = vsel %vm840, %v856, %v857
    %v859 = vrot.slane %v814, 6
    %v860 = vrot.slane %v822, 6
    %v861 = vsel %vm840, %v859, %v860
    %v862 = vrot.slane %v815, 6
    %v863 = vrot.slane %v823, 6
    %v864 = vsel %vm840, %v862, %v863
    %v873 = vadd.f32 %v776, %v843
    %v874 = vadd.f32 %v777, %v846
    %v875 = vadd.f32 %v778, %v849
    %v876 = vadd.f32 %v779, %v852
    %v877 = vadd.f32 %v780, %v855
    %v878 = vadd.f32 %v781, %v858
    %v879 = vadd.f32 %v782, %v861
    %v880 = vadd.f32 %v783, %v864
    %s881 = sld [smem:[#allocation8]]
    %v882 = vstv %s881
    %v883 = vsel %vm73, %v882, %v873
    %v884 = vsel %vm74, %v882, %v874
    %v885 = vsel %vm75, %v882, %v875
    %v886 = vsel %vm76, %v882, %v876
    %v887 = vsel %vm77, %v882, %v877
    %v888 = vsel %vm78, %v882, %v878
    %v889 = vsel %vm79, %v882, %v879
    %v890 = vsel %vm80, %v882, %v880
    %s891 = sld [smem:[#allocation8 + $0x1]]
    %v892 = vstv %s891
    %v901 = vrot.slane %v873, 1
    %v902 = vrot.slane %v874, 1
    %v903 = vrot.slane %v875, 1
    %v904 = vrot.slane %v876, 1
    %v905 = vrot.slane %v877, 1
    %v906 = vrot.slane %v878, 1
    %v907 = vrot.slane %v879, 1
    %v908 = vrot.slane %v880, 1
    %v917 = vsel %vm73, %v892, %v901
    %v918 = vsel %vm74, %v892, %v902
    %v919 = vsel %vm75, %v892, %v903
    %v920 = vsel %vm76, %v892, %v904
    %v921 = vsel %vm77, %v892, %v905
    %v922 = vsel %vm78, %v892, %v906
    %v923 = vsel %vm79, %v892, %v907
    %v924 = vsel %vm80, %v892, %v908
    %s925 = sld [smem:[#allocation8 + $0x2]]
    %v926 = vstv %s925
    %v927 = vrot.slane %v873, 2
    %v928 = vrot.slane %v874, 2
    %v929 = vrot.slane %v875, 2
    %v930 = vrot.slane %v876, 2
    %v931 = vrot.slane %v877, 2
    %v932 = vrot.slane %v878, 2
    %v933 = vrot.slane %v879, 2
    %v934 = vrot.slane %v880, 2
    %v943 = vsel %vm73, %v926, %v927
    %v944 = vsel %vm74, %v926, %v928
    %v945 = vsel %vm75, %v926, %v929
    %v946 = vsel %vm76, %v926, %v930
    %v947 = vsel %vm77, %v926, %v931
    %v948 = vsel %vm78, %v926, %v932
    %v949 = vsel %vm79, %v926, %v933
    %v950 = vsel %vm80, %v926, %v934
    %v951 = vsel %vm73, 0.0, 1.0
    %v952 = vsel %vm74, 0.0, 1.0
    %v953 = vsel %vm75, 0.0, 1.0
    %v954 = vsel %vm76, 0.0, 1.0
    %v955 = vsel %vm77, 0.0, 1.0
    %v956 = vsel %vm78, 0.0, 1.0
    %v957 = vsel %vm79, 0.0, 1.0
    %v958 = vsel %vm80, 0.0, 1.0
    %v967 = vrot.slane %v917, 7
    %v968 = vrot.slane %v918, 7
    %v969 = vrot.slane %v919, 7
    %v970 = vrot.slane %v920, 7
    %v971 = vrot.slane %v921, 7
    %v972 = vrot.slane %v922, 7
    %v973 = vrot.slane %v923, 7
    %v974 = vrot.slane %v924, 7
    %v991 = vrot.slane %v943, 6
    %v992 = vrot.slane %v944, 6
    %v993 = vrot.slane %v945, 6
    %v994 = vrot.slane %v946, 6
    %v995 = vrot.slane %v947, 6
    %v996 = vrot.slane %v948, 6
    %v997 = vrot.slane %v949, 6
    %v998 = vrot.slane %v950, 6
    %v1015 = vrot.slane %v951, 5
    %v1016 = vrot.slane %v952, 5
    %v1017 = vrot.slane %v953, 5
    %v1018 = vrot.slane %v954, 5
    %v1019 = vrot.slane %v955, 5
    %v1020 = vrot.slane %v956, 5
    %v1021 = vrot.slane %v957, 5
    %v1022 = vrot.slane %v958, 5
    %vm1031 = vcmask 1040384
    %v1032 = vsel %vm1031, %v883, %v967
    %v1033 = vsel %vm1031, %v884, %v968
    %v1034 = vsel %vm1031, %v885, %v969
    %v1035 = vsel %vm1031, %v886, %v970
    %v1036 = vsel %vm1031, %v887, %v971
    %v1037 = vsel %vm1031, %v888, %v972
    %v1038 = vsel %vm1031, %v889, %v973
    %v1039 = vsel %vm1031, %v890, %v974
    %v1040 = vsel %vm840, %v1032, %v991
    %v1041 = vsel %vm840, %v1033, %v992
    %v1042 = vsel %vm840, %v1034, %v993
    %v1043 = vsel %vm840, %v1035, %v994
    %v1044 = vsel %vm840, %v1036, %v995
    %v1045 = vsel %vm840, %v1037, %v996
    %v1046 = vsel %vm840, %v1038, %v997
    %v1047 = vsel %vm840, %v1039, %v998
    %vm1048 = vcmask 1042432
    %v1049 = vsel %vm1048, %v1040, %v1015
    %v1050 = vsel %vm1048, %v1041, %v1016
    %v1051 = vsel %vm1048, %v1042, %v1017
    %v1052 = vsel %vm1048, %v1043, %v1018
    %v1053 = vsel %vm1048, %v1044, %v1019
    %v1054 = vsel %vm1048, %v1045, %v1020
    %v1055 = vsel %vm1048, %v1046, %v1021
    %v1056 = vsel %vm1048, %v1047, %v1022
    %v1065 = vrot.slane %v1050, 4
    %v1066 = vrot.slane %v1052, 4
    %v1067 = vrot.slane %v1054, 4
    %v1068 = vrot.slane %v1056, 4
    %vm1069 = vcmask 1043456
    %v1070 = vsel %vm1069, %v1049, %v1065
    %v1071 = vsel %vm1069, %v1051, %v1066
    %v1072 = vsel %vm1069, %v1053, %v1067
    %v1073 = vsel %vm1069, %v1055, %v1068
    %1078 = vst [vmem:[#allocation9] sm:$0xff] %v1070
    %1079 = vst [vmem:[#allocation9 + $0x8] sm:$0xff] %v1071
    %1080 = vst [vmem:[#allocation9 + $0x10] sm:$0xff] %v1072
    %1081 = vst [vmem:[#allocation9 + $0x18] sm:$0xff] %v1073
    // Predicated region
    $region26: #{tpu_custom_call.1} parent=1 // pred_check
      _
    $region27: #{tpu_custom_call.1} parent=1 // pred_check_branch
      %1083 = sbr.rel (0) target = $region29
    $region28: #{tpu_custom_call.1} parent=1 // pred_region
      %1085 = vsyncadd [#allocation4], 0
      %s1087 = sshll.u32 [#allocation9], 4
      %s1088 = int_to_ptr.vmem [resolvable:$true] %s1087
      %s1089 = sshll.u32 %s3, 4
      %s1090 = int_to_ptr.hbm [resolvable:$true] %s1089
      %1092 = dma.vmem_to_hbm [thread:$0]  %s1088, 512, %s1090, [#allocation4]
    $region29: #{tpu_custom_call.1} parent=1 // pred_fallthru
      _
    // Predicated region
    $region30: #{tpu_custom_call.1} parent=1 // pred_check
      _
    $region31: #{tpu_custom_call.1} parent=1 // pred_check_branch
      %1094 = sbr.rel (0) target = $region33
    $region32: #{tpu_custom_call.1} parent=1 // pred_region
      %1096 = dma.done [#allocation4], 512
    $region33: #{tpu_custom_call.1} parent=1 // pred_fallthru
      _
    %1097 = vsyncpa [#allocation3], 1
    %1098 = vsyncpa [#allocation7], 1
    %1099 = vsyncpa [#allocation4], 1
    %1100 = vsyncpa [#allocation5], 1

</llo_original>
